<compile_context>
chip_gen: v6e
topology: v6e:2x2x1
jax: 0.10.0
libtpu: 0.0.40
codegen_flags: <defaults>
</compile_context>

<pallas_src>
import functools

import jax
import jax.numpy as jnp
from jax.experimental import pallas as pl
from jax.experimental.pallas import tpu as pltpu


def _quantizer_kernel(x_ref, w_ref, wt_ref, w2h_ref, q_ref, counts_ref, *,
                      m_total, mask_rows, bf16_cross):
    """One grid step: quantized rows (transposed, lane-dense) + code-usage histogram."""
    x = x_ref[...]                       # (TM, D) activation row tile
    w = w_ref[...]                       # (K, D)  codebook, f32 (resident)
    wt = wt_ref[...]                     # (D, K)  codebook^T, f32 (resident, hoisted)
    w2h = w2h_ref[...]                   # (K, 1)  0.5*||w||^2 (resident, hoisted)
    tm = x.shape[0]
    k = w.shape[0]

    if bf16_cross:
        xc = x.astype(jnp.bfloat16)
        wc = w.astype(jnp.bfloat16)
    else:
        xc = x.astype(jnp.float32)
        wc = w.astype(jnp.float32)

    # Transposed distance surrogate on the MXU:
    #   d_T[k, m] = 0.5*||w_k||^2 - <w_k, x_m>
    # (||x||^2 dropped and the -2 scale folded into w2h: both argmin-invariant.)
    cross_t = jax.lax.dot_general(
        wc, xc, (((1,), (1,)), ((), ())),
        preferred_element_type=jnp.float32)                            # (K, TM)
    d_t = w2h - cross_t                                                # (K, TM)

    # Nearest code per column: argmin over the sublane (K) axis -> cross-vreg VPU
    # compare/selects + one 8-wide XLU step (vs log2(128) XLU stages per vreg for the
    # lane-axis argmin).  First-min-wins tie-break, same as torch.argmin.
    idx = jnp.argmin(d_t, axis=0, keepdims=True).astype(jnp.int32)     # (1, TM)

    # one-hot in (K, TM) orientation from a (K, 1) sublane iota (no (TM, K) iota).
    code_iota = jax.lax.broadcasted_iota(jnp.int32, (k, 1), 0)         # (K, 1)
    one_hot = code_iota == idx                                         # (K, TM) bool
    if mask_rows:
        # Zero out columns that correspond to padded rows (m_total is a static int).
        row = pl.program_id(0) * tm + jax.lax.broadcasted_iota(jnp.int32, (1, tm), 1)
        one_hot = jnp.logical_and(one_hot, row < m_total)
    one_hot_f = one_hot.astype(jnp.float32)

    # Quantized rows, transposed & lane-dense: (D, TM) = W^T @ one_hot_T.
    # Exactly one nonzero per column -> bit-exact codebook rows (kept in f32).
    q_t = jnp.dot(wt, one_hot_f, preferred_element_type=jnp.float32)
    q_ref[...] = q_t.astype(q_ref.dtype)

    # Per-tile code-usage histogram: tiny lane reduction of the already-built one-hot.
    counts_ref[...] = jnp.sum(one_hot_f, axis=1, keepdims=True)[None]  # (1, K, 1)


def _ceil_to(x, q):
    return -(-x // q) * q


def _choose_tiling(m, tile_m):
    """Row tile TM (multiple of 128), tile count, padded row count.

    Large TM amortizes the ~0.35us/grid-step overhead; >=2 (and preferably even) tiles
    keep both v7x TensorCores busy (the grid axis is 'parallel'); TM multiple of 128
    keeps the (D, TM) quantized store lane-dense and block constraints satisfied.
    """
    if m <= 128:
        tm = 128
    elif m <= 256:
        tm = _ceil_to(-(-m // 2), 128)                 # 2 tiles
    else:
        tm = min(tile_m, _ceil_to(m, 128) // 2)        # cap at ~M/2 -> >= 2 tiles
        tm = max(128, (tm // 128) * 128)
    num_tiles = -(-m // tm)
    if num_tiles > 1 and num_tiles % 2 == 1:           # best-effort even tile count (v7x)
        cand = max(128, _ceil_to(-(-m // (num_tiles + 1)), 128))
        if (-(-m // cand)) % 2 == 0:
            tm = cand
            num_tiles = -(-m // cand)
    return tm, num_tiles, num_tiles * tm


def quantizer_forward(x_nchw, codebook, beta=0.25, tile_m=4096, bf16_cross=True):
    """Eval-mode Quantizer.forward. Returns (loss=None, quantized_nchw, perplexity)."""
    n, c, h, w = x_nchw.shape
    k, d = codebook.shape
    assert c == d, "channel dim must equal embeddings_dim"

    # glue: NCHW -> NHWC -> (M, D), padded to num_tiles*TM rows (pad rows masked in-kernel).
    flatten = jnp.transpose(x_nchw, (0, 2, 3, 1)).reshape(-1, d)
    m = flatten.shape[0]
    tm, num_tiles, m_pad = _choose_tiling(m, tile_m)
    if m_pad > m:
        flatten = jnp.pad(flatten, ((0, m_pad - m), (0, 0)))

    # Grid-invariant codebook terms hoisted to the wrapper (f32, like the torch weight).
    codebook_f32 = codebook.astype(jnp.float32)
    codebook_t = codebook_f32.T                                                 # (D, K)
    w2_half = 0.5 * jnp.sum(codebook_f32 * codebook_f32, axis=1, keepdims=True)  # (K, 1)

    kernel = functools.partial(
        _quantizer_kernel, m_total=m, mask_rows=(m_pad != m), bf16_cross=bf16_cross)

    # Rough per-step VMEM need; only override the scoped default (16 MiB on v5e) when a
    # very large tile actually requires it.
    vmem_est = (4 * tm * k * 4          # (K, TM) f32 temporaries (cross/d, one_hot, argmin)
                + 2 * 2 * tm * d * 4    # x + quantized blocks, double-buffered
                + 3 * k * d * 4 + k * 4 # resident codebook, codebook^T, 0.5*||w||^2
                + (2 << 20))            # headroom
    vmem_limit = None if vmem_est <= (16 << 20) else min(vmem_est, 48 << 20)

    q_t, counts_part = pl.pallas_call(
        kernel,
        out_shape=(
            jax.ShapeDtypeStruct((d, m_pad), x_nchw.dtype),           # quantized^T, lane-dense
            jax.ShapeDtypeStruct((num_tiles, k, 1), jnp.float32),     # per-tile histograms
        ),
        grid_spec=pltpu.PrefetchScalarGridSpec(
            num_scalar_prefetch=0,
            grid=(num_tiles,),
            in_specs=[
                pl.BlockSpec((tm, d), lambda i: (i, 0)),   # activation row tile
                pl.BlockSpec((k, d), lambda i: (0, 0)),    # codebook (resident)
                pl.BlockSpec((d, k), lambda i: (0, 0)),    # codebook^T (resident)
                pl.BlockSpec((k, 1), lambda i: (0, 0)),    # hoisted 0.5*||w||^2
            ],
            out_specs=[
                pl.BlockSpec((d, tm), lambda i: (0, i)),
                pl.BlockSpec((1, k, 1), lambda i: (i, 0, 0)),
            ],
        ),
        compiler_params=pltpu.CompilerParams(
            # Every output block is written by exactly one grid step -> fully parallel
            # axis (megacore-shardable across v7x's 2 TensorCores; no-op on v5e/v6e).
            dimension_semantics=("parallel",),
            vmem_limit_bytes=vmem_limit,
        ),
    )(flatten, codebook_f32, codebook_t, w2_half)

    # glue: perplexity from summed per-tile histograms (padded rows already excluded).
    counts = jnp.sum(counts_part, axis=(0, 2))                 # (K,)
    e_mean = counts / jnp.float32(m)
    perplexity = jnp.exp(-jnp.sum(e_mean * jnp.log(e_mean + 1e-10)))

    # Straight-through estimator: forward value == quantized codebook rows.
    quantized = jnp.transpose(q_t[:, :m].reshape(c, n, h, w), (1, 0, 2, 3))

    loss = None  # module is in eval mode (self.training == False)
    return loss, quantized, perplexity


def _reference(x, codebook):
    """Pure-JAX reference of the eval-mode forward."""
    n, c, h, w = x.shape
    k = codebook.shape[0]
    flat = jnp.transpose(x, (0, 2, 3, 1)).reshape(-1, c)
    d_ref = (jnp.sum(flat ** 2, 1, keepdims=True)
             - 2.0 * flat @ codebook.T
             + jnp.sum(codebook ** 2, 1)[None, :])
    idx_ref = jnp.argmin(d_ref, axis=1)
    q_ref = jnp.transpose(codebook[idx_ref].reshape(n, h, w, c), (0, 3, 1, 2))
    oh_mean = jnp.mean(jax.nn.one_hot(idx_ref, k, dtype=jnp.float32), axis=0)
    ppl_ref = jnp.exp(-jnp.sum(oh_mean * jnp.log(oh_mean + 1e-10)))
    return q_ref, ppl_ref


if __name__ == "__main__":
    num_embeddings = 128
    embeddings_dim = 32

    key = jax.random.PRNGKey(0)
    k_x1, k_x2, k_x3, k_cb = jax.random.split(key, 4)

    # Deterministic parameter init matching nn.Embedding + .uniform_(-100/K, 100/K)
    bound = 100.0 / num_embeddings
    codebook = jax.random.uniform(
        k_cb, (num_embeddings, embeddings_dim),
        minval=-bound, maxval=bound, dtype=jnp.float32)

    # Check 1: single tile, no padding (M = 2*8*8 = 128), f32 parity path.
    x1 = jax.random.normal(k_x1, (2, embeddings_dim, 8, 8), dtype=jnp.float32)
    loss1, q1, ppl1 = quantizer_forward(x1, codebook, beta=0.25, bf16_cross=False)
    q1 = jax.block_until_ready(q1)
    ppl1 = jax.block_until_ready(ppl1)
    q1_ref, ppl1_ref = _reference(x1, codebook)
    assert loss1 is None
    assert jnp.allclose(q1, q1_ref, atol=1e-5), "quantized mismatch (single tile)"
    assert jnp.allclose(ppl1, ppl1_ref, atol=1e-4), "perplexity mismatch (single tile)"

    # Check 2: multi-tile parallel grid + histogram reduction (M = 1024, 4 tiles of 256).
    x2 = jax.random.normal(k_x2, (4, embeddings_dim, 16, 16), dtype=jnp.float32)
    loss2, q2, ppl2 = quantizer_forward(x2, codebook, beta=0.25, tile_m=256, bf16_cross=False)
    q2 = jax.block_until_ready(q2)
    ppl2 = jax.block_until_ready(ppl2)
    q2_ref, ppl2_ref = _reference(x2, codebook)
    assert loss2 is None
    assert jnp.allclose(q2, q2_ref, atol=1e-5), "quantized mismatch (multi tile)"
    assert jnp.allclose(ppl2, ppl2_ref, atol=1e-4), "perplexity mismatch (multi tile)"

    # Check 3: awkward spatial size -> padded rows masked in-kernel (M = 1*7*9 = 63).
    x3 = jax.random.normal(k_x3, (1, embeddings_dim, 7, 9), dtype=jnp.float32)
    loss3, q3, ppl3 = quantizer_forward(x3, codebook, beta=0.25, bf16_cross=False)
    q3 = jax.block_until_ready(q3)
    ppl3 = jax.block_until_ready(ppl3)
    q3_ref, ppl3_ref = _reference(x3, codebook)
    assert loss3 is None
    assert jnp.allclose(q3, q3_ref, atol=1e-5), "quantized mismatch (padded rows)"
    assert jnp.allclose(ppl3, ppl3_ref, atol=1e-4), "perplexity mismatch (padded rows)"

    # Check 4: default fast path (bf16 cross matmul, default tile -> 2 tiles of 512).
    # Near-ties may legitimately pick a different (equally close) code under bf16, so
    # verify every quantized row is an exact codebook row and perplexity is sane.
    loss4, q4, ppl4 = quantizer_forward(x2, codebook, beta=0.25)
    q4 = jax.block_until_ready(q4)
    ppl4 = jax.block_until_ready(ppl4)
    assert loss4 is None
    assert q4.shape == x2.shape
    qf = jnp.transpose(q4, (0, 2, 3, 1)).reshape(-1, embeddings_dim)
    row_err = jnp.min(
        jnp.max(jnp.abs(qf[:, None, :] - codebook[None, :, :]), axis=-1), axis=-1)
    assert float(jnp.max(row_err)) < 1e-6, "bf16 path produced a non-codebook row"
    assert bool(jnp.isfinite(ppl4)) and 0.0 < float(ppl4) <= num_embeddings + 1e-3

    print("KERNEL_OK")
</pallas_src>

<mosaic_0001>
module attributes {stable_mosaic.version = 11 : i64} {
  func.func @_quantizer_kernel(%arg0: i32, %arg1: memref<128x32xf32, #tpu.memory_space<vmem>>, %arg2: memref<128x32xf32, #tpu.memory_space<vmem>>, %arg3: memref<32x128xf32, #tpu.memory_space<vmem>>, %arg4: memref<128x1xf32, #tpu.memory_space<vmem>>, %arg5: memref<32x128xf32, #tpu.memory_space<vmem>>, %arg6: memref<1x128x1xf32, #tpu.memory_space<vmem>>) attributes {dimension_semantics = [#tpu.dimension_semantics<parallel>], iteration_bounds = array<i64: 1>, scalar_prefetch = 0 : i64, scratch_operands = 0 : i64, tpu.core_type = #tpu.core_type<tc>, window_params = [{transform_indices = @transform_0, window_bounds = array<i64: 128, 32>}, {pipeline_mode = #tpu.pipeline_mode<synchronous>, transform_indices = @transform_1, window_bounds = array<i64: 128, 32>}, {pipeline_mode = #tpu.pipeline_mode<synchronous>, transform_indices = @transform_2, window_bounds = array<i64: 32, 128>}, {pipeline_mode = #tpu.pipeline_mode<synchronous>, transform_indices = @transform_3, window_bounds = array<i64: 128, 1>}, {transform_indices = @transform_4, window_bounds = array<i64: 32, 128>}, {transform_indices = @transform_5, window_bounds = array<i64: 1, 128, 1>}]} {
    %c0 = arith.constant 0 : index
    %c0_0 = arith.constant 0 : index
    %0 = vector.load %arg1[%c0, %c0_0] : memref<128x32xf32, #tpu.memory_space<vmem>>, vector<128x32xf32>
    %c0_1 = arith.constant 0 : index
    %c0_2 = arith.constant 0 : index
    %1 = vector.load %arg2[%c0_1, %c0_2] : memref<128x32xf32, #tpu.memory_space<vmem>>, vector<128x32xf32>
    %c0_3 = arith.constant 0 : index
    %c0_4 = arith.constant 0 : index
    %2 = vector.load %arg3[%c0_3, %c0_4] : memref<32x128xf32, #tpu.memory_space<vmem>>, vector<32x128xf32>
    %c0_5 = arith.constant 0 : index
    %c0_6 = arith.constant 0 : index
    %3 = vector.load %arg4[%c0_5, %c0_6] : memref<128x1xf32, #tpu.memory_space<vmem>>, vector<128x1xf32>
    %cst = arith.constant dense<0.000000e+00> : vector<128x128xf32>
    %4 = tpu.matmul %1, %0, %cst {dimension_numbers = #tpu.dot_dimension_numbers<[1], [1], [0], [0], [0, 0, 1, 0], [], []>} : vector<128x32xf32>, vector<128x32xf32>, vector<128x128xf32> -> vector<128x128xf32>
    %5 = vector.broadcast %3 : vector<128x1xf32> to vector<128x128xf32>
    %6 = arith.subf %5, %4 : vector<128x128xf32>
    %7 = tpu.reduce_index %6 {axis = 0 : i32, kind = #tpu.reduction_kind<arg_min>} : vector<128x128xf32> -> vector<128xi32>
    %8 = vector.shape_cast %7 : vector<128xi32> to vector<1x128xi32>
    %9 = tpu.iota {dimensions = array<i32: 0>} : vector<128x1xi32>
    %10 = vector.broadcast %9 : vector<128x1xi32> to vector<128x128xi32>
    %11 = vector.broadcast %8 : vector<1x128xi32> to vector<128x128xi32>
    %12 = arith.cmpi eq, %10, %11 : vector<128x128xi32>
    %13 = arith.extui %12 : vector<128x128xi1> to vector<128x128xi32>
    %14 = arith.sitofp %13 : vector<128x128xi32> to vector<128x128xf32>
    %cst_7 = arith.constant dense<0.000000e+00> : vector<32x128xf32>
    %15 = tpu.matmul %2, %14, %cst_7 {dimension_numbers = #tpu.dot_dimension_numbers<[1], [0], [0], [1], [0, 0, 1, 1], [], []>} : vector<32x128xf32>, vector<128x128xf32>, vector<32x128xf32> -> vector<32x128xf32>
    %c0_8 = arith.constant 0 : index
    %c0_9 = arith.constant 0 : index
    %16 = vector.load %arg5[%c0_8, %c0_9] : memref<32x128xf32, #tpu.memory_space<vmem>>, vector<32x128xf32>
    tpu.vector_store %arg5[%c0_8, %c0_9], %15 {strides = array<i32>} : memref<32x128xf32, #tpu.memory_space<vmem>>, vector<32x128xf32>,
    %cst_10 = arith.constant dense<0.000000e+00> : vector<128xf32>
    %17 = vector.multi_reduction <add>, %14, %cst_10 [1] : vector<128x128xf32> to vector<128xf32>
    %18 = vector.shape_cast %17 : vector<128xf32> to vector<128x1xf32>
    %19 = vector.shape_cast %18 : vector<128x1xf32> to vector<1x128x1xf32>
    %c0_11 = arith.constant 0 : index
    %c0_12 = arith.constant 0 : index
    %c0_13 = arith.constant 0 : index
    %20 = vector.load %arg6[%c0_11, %c0_12, %c0_13] : memref<1x128x1xf32, #tpu.memory_space<vmem>>, vector<1x128x1xf32>
    tpu.vector_store %arg6[%c0_11, %c0_12, %c0_13], %19 {strides = array<i32>} : memref<1x128x1xf32, #tpu.memory_space<vmem>>, vector<1x128x1xf32>,
    return
  }
  func.func @transform_0(%arg0: i32) -> (i32, i32) {
    %c0_i32 = arith.constant 0 : i32
    %c0_i32_0 = arith.constant 0 : i32
    return %arg0, %c0_i32 : i32, i32
  }
  func.func @transform_1(%arg0: i32) -> (i32, i32) {
    %c0_i32 = arith.constant 0 : i32
    %c0_i32_0 = arith.constant 0 : i32
    %c0_i32_1 = arith.constant 0 : i32
    return %c0_i32, %c0_i32_0 : i32, i32
  }
  func.func @transform_2(%arg0: i32) -> (i32, i32) {
    %c0_i32 = arith.constant 0 : i32
    %c0_i32_0 = arith.constant 0 : i32
    %c0_i32_1 = arith.constant 0 : i32
    return %c0_i32, %c0_i32_0 : i32, i32
  }
  func.func @transform_3(%arg0: i32) -> (i32, i32) {
    %c0_i32 = arith.constant 0 : i32
    %c0_i32_0 = arith.constant 0 : i32
    %c0_i32_1 = arith.constant 0 : i32
    return %c0_i32, %c0_i32_0 : i32, i32
  }
  func.func @transform_4(%arg0: i32) -> (i32, i32) {
    %c0_i32 = arith.constant 0 : i32
    %c0_i32_0 = arith.constant 0 : i32
    return %c0_i32, %arg0 : i32, i32
  }
  func.func @transform_5(%arg0: i32) -> (i32, i32, i32) {
    %c0_i32 = arith.constant 0 : i32
    %c0_i32_0 = arith.constant 0 : i32
    %c0_i32_1 = arith.constant 0 : i32
    return %arg0, %c0_i32, %c0_i32_0 : i32, i32, i32
  }
}

</mosaic_0001>

<llo_original>
// kernel: tpu_custom_call.1
$region0: #{tpu_custom_call.1}
  #allocation0 [shape = 'u32[]', space=smem, size = 0x4, offset = 0x4, fixed_abs, tag = 'smem constant byte address 0x4 - core index']
  #allocation1 [shape = 'u32[144,128]{1,0:T(1,128)}', space=vmem, size = 0x12000, scoped, tag = 'internal scratch']
  %s0 = inlined_call_operand.vmem [shape: f32[128,32], index: 0, kind: input, shape index: {}]
  %s1 = inlined_call_operand.vmem [shape: f32[128,32], index: 1, kind: input, shape index: {}]
  %s2 = inlined_call_operand.vmem [shape: f32[32,128], index: 2, kind: input, shape index: {}]
  %s3 = inlined_call_operand.vmem [shape: f32[128,1], index: 3, kind: input, shape index: {}]
  %s4 = inlined_call_operand.hbm [shape: f32[32,128], index: 4, kind: output, shape index: {0}]
  %s5 = inlined_call_operand.vmem [shape: f32[1,128,1], index: 5, kind: output, shape index: {1}]
  %6 = xla_tuple %s4, %s5
  %s7 = sld [smem:[#allocation0]]
  $region34: #{tpu_custom_call.1} parent=0
    _
  %s9 = ssub.s32 1, %s7
  %s10 = scalar_select 0, %s9, %s7
  $region1: #{tpu_custom_call.1} parent=0
    #allocation2 [shape = 'u8[16384]{0}', space=vmem, size = 0x4000, scoped, tag = 'output window, operand 0, single buffered']
    #allocation3 [shape = 's32[1]{0}', space=sflag, size = 0x4, scoped, tag = 'scoped memory for tpu_custom_call.1']
    %11 = vsyncpa [#allocation3], 0
    // Predicated region
    $region2: #{tpu_custom_call.1} parent=1 // pred_check
      _
    $region3: #{tpu_custom_call.1} parent=1 // pred_check_branch
      %13 = sbr.rel (0) target = $region5
    $region4: #{tpu_custom_call.1} parent=1 // pred_region
      _
    $region5: #{tpu_custom_call.1} parent=1 // pred_fallthru
      _
    // Predicated region
    $region6: #{tpu_custom_call.1} parent=1 // pred_check
      _
    $region7: #{tpu_custom_call.1} parent=1 // pred_check_branch
      %15 = sbr.rel (0) target = $region9
    $region8: #{tpu_custom_call.1} parent=1 // pred_region
      _
    $region9: #{tpu_custom_call.1} parent=1 // pred_fallthru
      _
    // Predicated region
    $region10: #{tpu_custom_call.1} parent=1 // pred_check
      _
    $region11: #{tpu_custom_call.1} parent=1 // pred_check_branch
      %17 = sbr.rel (0) target = $region13
    $region12: #{tpu_custom_call.1} parent=1 // pred_region
      _
    $region13: #{tpu_custom_call.1} parent=1 // pred_fallthru
      _
    // Predicated region
    $region14: #{tpu_custom_call.1} parent=1 // pred_check
      _
    $region15: #{tpu_custom_call.1} parent=1 // pred_check_branch
      %19 = sbr.rel (0) target = $region17
    $region16: #{tpu_custom_call.1} parent=1 // pred_region
      _
    $region17: #{tpu_custom_call.1} parent=1 // pred_fallthru
      _
    %v20 = vld [vmem:[%s0] sm:$0xff]
    %v21 = vld [vmem:[%s0 + $0x8] sm:$0xff]
    %v22 = vld [vmem:[%s0 + $0x10] sm:$0xff]
    %v23 = vld [vmem:[%s0 + $0x18] sm:$0xff]
    %v24 = vld [vmem:[%s0 + $0x20] sm:$0xff]
    %v25 = vld [vmem:[%s0 + $0x28] sm:$0xff]
    %v26 = vld [vmem:[%s0 + $0x30] sm:$0xff]
    %v27 = vld [vmem:[%s0 + $0x38] sm:$0xff]
    %v28 = vld [vmem:[%s0 + $0x40] sm:$0xff]
    %v29 = vld [vmem:[%s0 + $0x48] sm:$0xff]
    %v30 = vld [vmem:[%s0 + $0x50] sm:$0xff]
    %v31 = vld [vmem:[%s0 + $0x58] sm:$0xff]
    %v32 = vld [vmem:[%s0 + $0x60] sm:$0xff]
    %v33 = vld [vmem:[%s0 + $0x68] sm:$0xff]
    %v34 = vld [vmem:[%s0 + $0x70] sm:$0xff]
    %v35 = vld [vmem:[%s0 + $0x78] sm:$0xff]
    %v36 = vld [vmem:[%s1] sm:$0xff]
    %v37 = vld [vmem:[%s1 + $0x8] sm:$0xff]
    %v38 = vld [vmem:[%s1 + $0x10] sm:$0xff]
    %v39 = vld [vmem:[%s1 + $0x18] sm:$0xff]
    %v40 = vld [vmem:[%s1 + $0x20] sm:$0xff]
    %v41 = vld [vmem:[%s1 + $0x28] sm:$0xff]
    %v42 = vld [vmem:[%s1 + $0x30] sm:$0xff]
    %v43 = vld [vmem:[%s1 + $0x38] sm:$0xff]
    %v44 = vld [vmem:[%s1 + $0x40] sm:$0xff]
    %v45 = vld [vmem:[%s1 + $0x48] sm:$0xff]
    %v46 = vld [vmem:[%s1 + $0x50] sm:$0xff]
    %v47 = vld [vmem:[%s1 + $0x58] sm:$0xff]
    %v48 = vld [vmem:[%s1 + $0x60] sm:$0xff]
    %v49 = vld [vmem:[%s1 + $0x68] sm:$0xff]
    %v50 = vld [vmem:[%s1 + $0x70] sm:$0xff]
    %v51 = vld [vmem:[%s1 + $0x78] sm:$0xff]
    %v52 = vld [vmem:[%s2] sm:$0xff]
    %v53 = vld [vmem:[%s2 + $0x8] sm:$0xff]
    %v54 = vld [vmem:[%s2 + $0x10] sm:$0xff]
    %v55 = vld [vmem:[%s2 + $0x18] sm:$0xff]
    %v56 = vld [vmem:[%s3] sm:$0xff]
    %v57 = vld [vmem:[%s3 + $0x8] sm:$0xff]
    %v58 = vld [vmem:[%s3 + $0x10] sm:$0xff]
    %v59 = vld [vmem:[%s3 + $0x18] sm:$0xff]
    %v60 = vld [vmem:[%s3 + $0x20] sm:$0xff]
    %v61 = vld [vmem:[%s3 + $0x28] sm:$0xff]
    %v62 = vld [vmem:[%s3 + $0x30] sm:$0xff]
    %v63 = vld [vmem:[%s3 + $0x38] sm:$0xff]
    %v64 = vld [vmem:[%s3 + $0x40] sm:$0xff]
    %v65 = vld [vmem:[%s3 + $0x48] sm:$0xff]
    %v66 = vld [vmem:[%s3 + $0x50] sm:$0xff]
    %v67 = vld [vmem:[%s3 + $0x58] sm:$0xff]
    %v68 = vld [vmem:[%s3 + $0x60] sm:$0xff]
    %v69 = vld [vmem:[%s3 + $0x68] sm:$0xff]
    %v70 = vld [vmem:[%s3 + $0x70] sm:$0xff]
    %v71 = vld [vmem:[%s3 + $0x78] sm:$0xff]
    %vm72 = vcmask 261120
    %v74 = vsel %vm72, %v36, 0
    %v77 = vsel %vm72, %v37, 0
    %v80 = vsel %vm72, %v38, 0
    %v83 = vsel %vm72, %v39, 0
    %v86 = vsel %vm72, %v40, 0
    %v89 = vsel %vm72, %v41, 0
    %v92 = vsel %vm72, %v42, 0
    %v95 = vsel %vm72, %v43, 0
    %v98 = vsel %vm72, %v44, 0
    %v101 = vsel %vm72, %v45, 0
    %v104 = vsel %vm72, %v46, 0
    %v107 = vsel %vm72, %v47, 0
    %v110 = vsel %vm72, %v48, 0
    %v113 = vsel %vm72, %v49, 0
    %v116 = vsel %vm72, %v50, 0
    %v119 = vsel %vm72, %v51, 0
    %v122 = vsel %vm72, %v20, 0
    %v125 = vsel %vm72, %v21, 0
    %v128 = vsel %vm72, %v22, 0
    %v131 = vsel %vm72, %v23, 0
    %v134 = vsel %vm72, %v24, 0
    %v137 = vsel %vm72, %v25, 0
    %v140 = vsel %vm72, %v26, 0
    %v143 = vsel %vm72, %v27, 0
    %v146 = vsel %vm72, %v28, 0
    %v149 = vsel %vm72, %v29, 0
    %v152 = vsel %vm72, %v30, 0
    %v155 = vsel %vm72, %v31, 0
    %v158 = vsel %vm72, %v32, 0
    %v161 = vsel %vm72, %v33, 0
    %v164 = vsel %vm72, %v34, 0
    %v167 = vsel %vm72, %v35, 0
    %169 = vmatprep.subr.mxu0 0.0
    %170 = vmatpush1.xpose.msra.mxu0 %v167
    %171 = vmatprep.subr.mxu0 0.0
    %172 = vmatpush1.xpose.msra.mxu0 %v164
    %173 = vmatprep.subr.mxu0 0.0
    %174 = vmatpush1.xpose.msra.mxu0 %v161
    %175 = vmatprep.subr.mxu0 0.0
    %176 = vmatpush1.xpose.msra.mxu0 %v158
    %177 = vmatprep.subr.mxu0 0.0
    %178 = vmatpush1.xpose.msra.mxu0 %v155
    %179 = vmatprep.subr.mxu0 0.0
    %180 = vmatpush1.xpose.msra.mxu0 %v152
    %181 = vmatprep.subr.mxu0 0.0
    %182 = vmatpush1.xpose.msra.mxu0 %v149
    %183 = vmatprep.subr.mxu0 0.0
    %184 = vmatpush1.xpose.msra.mxu0 %v146
    %185 = vmatprep.subr.mxu0 0.0
    %186 = vmatpush1.xpose.msra.mxu0 %v143
    %187 = vmatprep.subr.mxu0 0.0
    %188 = vmatpush1.xpose.msra.mxu0 %v140
    %189 = vmatprep.subr.mxu0 0.0
    %190 = vmatpush1.xpose.msra.mxu0 %v137
    %191 = vmatprep.subr.mxu0 0.0
    %192 = vmatpush1.xpose.msra.mxu0 %v134
    %193 = vmatprep.subr.mxu0 0.0
    %194 = vmatpush1.xpose.msra.mxu0 %v131
    %195 = vmatprep.subr.mxu0 0.0
    %196 = vmatpush1.xpose.msra.mxu0 %v128
    %197 = vmatprep.subr.mxu0 0.0
    %198 = vmatpush1.xpose.msra.mxu0 %v125
    %199 = vmatprep.subr.mxu0 0.0
    %200 = vmatpush1.xpose.msra.mxu0 %v122
    %201 = vmatprep.subr.mxu0 0.0
    %202 = vmatpush2.xpose.msra.mxu0 0.0
    %203 = vmatprep.subr.mxu0 0.0
    %204 = vmatpush2.xpose.msra.mxu0 0.0
    %205 = vmatprep.subr.mxu0 0.0
    %206 = vmatpush2.xpose.msra.mxu0 0.0
    %207 = vmatprep.subr.mxu0 0.0
    %208 = vmatpush2.xpose.msra.mxu0 0.0
    %209 = vmatprep.subr.mxu0 0.0
    %210 = vmatpush2.xpose.msra.mxu0 0.0
    %211 = vmatprep.subr.mxu0 0.0
    %212 = vmatpush2.xpose.msra.mxu0 0.0
    %213 = vmatprep.subr.mxu0 0.0
    %214 = vmatpush2.xpose.msra.mxu0 0.0
    %215 = vmatprep.subr.mxu0 0.0
    %216 = vmatpush2.xpose.msra.mxu0 0.0
    %217 = vmatprep.subr.mxu0 0.0
    %218 = vmatpush2.xpose.msra.mxu0 0.0
    %219 = vmatprep.subr.mxu0 0.0
    %220 = vmatpush2.xpose.msra.mxu0 0.0
    %221 = vmatprep.subr.mxu0 0.0
    %222 = vmatpush2.xpose.msra.mxu0 0.0
    %223 = vmatprep.subr.mxu0 0.0
    %224 = vmatpush2.xpose.msra.mxu0 0.0
    %225 = vmatprep.subr.mxu0 0.0
    %226 = vmatpush2.xpose.msra.mxu0 0.0
    %227 = vmatprep.subr.mxu0 0.0
    %228 = vmatpush2.xpose.msra.mxu0 0.0
    %229 = vmatprep.subr.mxu0 0.0
    %230 = vmatpush2.xpose.msra.mxu0 0.0
    %231 = vmatprep.subr.mxu0 0.0
    %232 = vmatpush2.xpose.msra.mxu0 0.0
    %233 = vmatprep.mubr.f32.mxu0 0.0
    %234 = vmatmul.mubr.f32.gmra.mxu0 %v74
    %v235 = vpop.f32.mrf.mxu0
    %v236 = vadd.f32 0.0, %v235
    %v237 = vpop.f32.mrf.mxu0
    %238 = vmatprep.mubr.f32.mxu0 0.0
    %239 = vmatmul.mubr.f32.gmra.mxu0 %v77
    %v240 = vpop.f32.mrf.mxu0
    %v241 = vadd.f32 0.0, %v240
    %v242 = vpop.f32.mrf.mxu0
    %243 = vmatprep.mubr.f32.mxu0 0.0
    %244 = vmatmul.mubr.f32.gmra.mxu0 %v80
    %v245 = vpop.f32.mrf.mxu0
    %v246 = vadd.f32 0.0, %v245
    %v247 = vpop.f32.mrf.mxu0
    %248 = vmatprep.mubr.f32.mxu0 0.0
    %249 = vmatmul.mubr.f32.gmra.mxu0 %v83
    %v250 = vpop.f32.mrf.mxu0
    %v251 = vadd.f32 0.0, %v250
    %v252 = vpop.f32.mrf.mxu0
    %253 = vmatprep.mubr.f32.mxu0 0.0
    %254 = vmatmul.mubr.f32.gmra.mxu0 %v86
    %v255 = vpop.f32.mrf.mxu0
    %v256 = vadd.f32 0.0, %v255
    %v257 = vpop.f32.mrf.mxu0
    %258 = vmatprep.mubr.f32.mxu0 0.0
    %259 = vmatmul.mubr.f32.gmra.mxu0 %v89
    %v260 = vpop.f32.mrf.mxu0
    %v261 = vadd.f32 0.0, %v260
    %v262 = vpop.f32.mrf.mxu0
    %263 = vmatprep.mubr.f32.mxu0 0.0
    %264 = vmatmul.mubr.f32.gmra.mxu0 %v92
    %v265 = vpop.f32.mrf.mxu0
    %v266 = vadd.f32 0.0, %v265
    %v267 = vpop.f32.mrf.mxu0
    %268 = vmatprep.mubr.f32.mxu0 0.0
    %269 = vmatmul.mubr.f32.gmra.mxu0 %v95
    %v270 = vpop.f32.mrf.mxu0
    %v271 = vadd.f32 0.0, %v270
    %v272 = vpop.f32.mrf.mxu0
    %273 = vmatprep.mubr.f32.mxu0 0.0
    %274 = vmatmul.mubr.f32.gmra.mxu0 %v98
    %v275 = vpop.f32.mrf.mxu0
    %v276 = vadd.f32 0.0, %v275
    %v277 = vpop.f32.mrf.mxu0
    %278 = vmatprep.mubr.f32.mxu0 0.0
    %279 = vmatmul.mubr.f32.gmra.mxu0 %v101
    %v280 = vpop.f32.mrf.mxu0
    %v281 = vadd.f32 0.0, %v280
    %v282 = vpop.f32.mrf.mxu0
    %283 = vmatprep.mubr.f32.mxu0 0.0
    %284 = vmatmul.mubr.f32.gmra.mxu0 %v104
    %v285 = vpop.f32.mrf.mxu0
    %v286 = vadd.f32 0.0, %v285
    %v287 = vpop.f32.mrf.mxu0
    %288 = vmatprep.mubr.f32.mxu0 0.0
    %289 = vmatmul.mubr.f32.gmra.mxu0 %v107
    %v290 = vpop.f32.mrf.mxu0
    %v291 = vadd.f32 0.0, %v290
    %v292 = vpop.f32.mrf.mxu0
    %293 = vmatprep.mubr.f32.mxu0 0.0
    %294 = vmatmul.mubr.f32.gmra.mxu0 %v110
    %v295 = vpop.f32.mrf.mxu0
    %v296 = vadd.f32 0.0, %v295
    %v297 = vpop.f32.mrf.mxu0
    %298 = vmatprep.mubr.f32.mxu0 0.0
    %299 = vmatmul.mubr.f32.gmra.mxu0 %v113
    %v300 = vpop.f32.mrf.mxu0
    %v301 = vadd.f32 0.0, %v300
    %v302 = vpop.f32.mrf.mxu0
    %303 = vmatprep.mubr.f32.mxu0 0.0
    %304 = vmatmul.mubr.f32.gmra.mxu0 %v116
    %v305 = vpop.f32.mrf.mxu0
    %v306 = vadd.f32 0.0, %v305
    %v307 = vpop.f32.mrf.mxu0
    %308 = vmatprep.mubr.f32.mxu0 0.0
    %309 = vmatmul.mubr.f32.gmra.mxu0 %v119
    %v310 = vpop.f32.mrf.mxu0
    %v311 = vadd.f32 0.0, %v310
    %v312 = vpop.f32.mrf.mxu0
    %313 = vdwg.mxu0
    %315 = vset.pattern.permute.xlu0 0
    %316 = vperm.xlu0 %315, %v56
    %v317 = vpop.permute.xlu0 %316
    %320 = vset.pattern.permute.xlu0 0
    %321 = vperm.xlu0 %320, %v57
    %v322 = vpop.permute.xlu0 %321
    %325 = vset.pattern.permute.xlu0 0
    %326 = vperm.xlu0 %325, %v58
    %v327 = vpop.permute.xlu0 %326
    %330 = vset.pattern.permute.xlu0 0
    %331 = vperm.xlu0 %330, %v59
    %v332 = vpop.permute.xlu0 %331
    %335 = vset.pattern.permute.xlu0 0
    %336 = vperm.xlu0 %335, %v60
    %v337 = vpop.permute.xlu0 %336
    %340 = vset.pattern.permute.xlu0 0
    %341 = vperm.xlu0 %340, %v61
    %v342 = vpop.permute.xlu0 %341
    %345 = vset.pattern.permute.xlu0 0
    %346 = vperm.xlu0 %345, %v62
    %v347 = vpop.permute.xlu0 %346
    %350 = vset.pattern.permute.xlu0 0
    %351 = vperm.xlu0 %350, %v63
    %v352 = vpop.permute.xlu0 %351
    %355 = vset.pattern.permute.xlu0 0
    %356 = vperm.xlu0 %355, %v64
    %v357 = vpop.permute.xlu0 %356
    %360 = vset.pattern.permute.xlu0 0
    %361 = vperm.xlu0 %360, %v65
    %v362 = vpop.permute.xlu0 %361
    %365 = vset.pattern.permute.xlu0 0
    %366 = vperm.xlu0 %365, %v66
    %v367 = vpop.permute.xlu0 %366
    %370 = vset.pattern.permute.xlu0 0
    %371 = vperm.xlu0 %370, %v67
    %v372 = vpop.permute.xlu0 %371
    %375 = vset.pattern.permute.xlu0 0
    %376 = vperm.xlu0 %375, %v68
    %v377 = vpop.permute.xlu0 %376
    %380 = vset.pattern.permute.xlu0 0
    %381 = vperm.xlu0 %380, %v69
    %v382 = vpop.permute.xlu0 %381
    %385 = vset.pattern.permute.xlu0 0
    %386 = vperm.xlu0 %385, %v70
    %v387 = vpop.permute.xlu0 %386
    %390 = vset.pattern.permute.xlu0 0
    %391 = vperm.xlu0 %390, %v71
    %v392 = vpop.permute.xlu0 %391
    %v394 = vsub.f32 %v317, %v236
    %v395 = vsub.f32 %v322, %v241
    %v396 = vsub.f32 %v327, %v246
    %v397 = vsub.f32 %v332, %v251
    %v398 = vsub.f32 %v337, %v256
    %v399 = vsub.f32 %v342, %v261
    %v400 = vsub.f32 %v347, %v266
    %v401 = vsub.f32 %v352, %v271
    %v402 = vsub.f32 %v357, %v276
    %v403 = vsub.f32 %v362, %v281
    %v404 = vsub.f32 %v367, %v286
    %v405 = vsub.f32 %v372, %v291
    %v406 = vsub.f32 %v377, %v296
    %v407 = vsub.f32 %v382, %v301
    %v408 = vsub.f32 %v387, %v306
    %v409 = vsub.f32 %v392, %v311
    %v410 = vlaneseq
    %v411 = vshrl.u32 %v410, 7
    %v412 = vadd.s32 %v411, 8
    %vm413 = vcmp.le.f32.partialorder %v394, %v395
    %v414 = vsel %vm413, %v394, %v395
    %v415 = vsel %vm413, %v411, %v412
    %v416 = vadd.s32 %v411, 16
    %vm417 = vcmp.le.f32.partialorder %v414, %v396
    %v418 = vsel %vm417, %v414, %v396
    %v419 = vsel %vm417, %v415, %v416
    %v420 = vadd.s32 %v411, 24
    %vm421 = vcmp.le.f32.partialorder %v418, %v397
    %v422 = vsel %vm421, %v418, %v397
    %v423 = vsel %vm421, %v419, %v420
    %v424 = vadd.s32 %v411, 32
    %vm425 = vcmp.le.f32.partialorder %v422, %v398
    %v426 = vsel %vm425, %v422, %v398
    %v427 = vsel %vm425, %v423, %v424
    %v428 = vadd.s32 %v411, 40
    %vm429 = vcmp.le.f32.partialorder %v426, %v399
    %v430 = vsel %vm429, %v426, %v399
    %v431 = vsel %vm429, %v427, %v428
    %v432 = vadd.s32 %v411, 48
    %vm433 = vcmp.le.f32.partialorder %v430, %v400
    %v434 = vsel %vm433, %v430, %v400
    %v435 = vsel %vm433, %v431, %v432
    %v436 = vadd.s32 %v411, 56
    %vm437 = vcmp.le.f32.partialorder %v434, %v401
    %v438 = vsel %vm437, %v434, %v401
    %v439 = vsel %vm437, %v435, %v436
    %v440 = vadd.s32 %v411, 64
    %vm441 = vcmp.le.f32.partialorder %v438, %v402
    %v442 = vsel %vm441, %v438, %v402
    %v443 = vsel %vm441, %v439, %v440
    %v444 = vadd.s32 %v411, 72
    %vm445 = vcmp.le.f32.partialorder %v442, %v403
    %v446 = vsel %vm445, %v442, %v403
    %v447 = vsel %vm445, %v443, %v444
    %v448 = vadd.s32 %v411, 80
    %vm449 = vcmp.le.f32.partialorder %v446, %v404
    %v450 = vsel %vm449, %v446, %v404
    %v451 = vsel %vm449, %v447, %v448
    %v452 = vadd.s32 %v411, 88
    %vm453 = vcmp.le.f32.partialorder %v450, %v405
    %v454 = vsel %vm453, %v450, %v405
    %v455 = vsel %vm453, %v451, %v452
    %v456 = vadd.s32 %v411, 96
    %vm457 = vcmp.le.f32.partialorder %v454, %v406
    %v458 = vsel %vm457, %v454, %v406
    %v459 = vsel %vm457, %v455, %v456
    %v460 = vadd.s32 %v411, 104
    %vm461 = vcmp.le.f32.partialorder %v458, %v407
    %v462 = vsel %vm461, %v458, %v407
    %v463 = vsel %vm461, %v459, %v460
    %v464 = vadd.s32 %v411, 112
    %vm465 = vcmp.le.f32.partialorder %v462, %v408
    %v466 = vsel %vm465, %v462, %v408
    %v467 = vsel %vm465, %v463, %v464
    %v468 = vadd.s32 %v411, 120
    %vm469 = vcmp.le.f32.partialorder %v466, %v409
    %v470 = vsel %vm469, %v466, %v409
    %v471 = vsel %vm469, %v467, %v468
    %v472 = vrot.slane %v470, 4
    %v473 = vrot.slane %v471, 4
    %vm474 = vcmp.le.f32.partialorder %v470, %v472
    %v475 = vsel %vm474, %v470, %v472
    %v476 = vsel %vm474, %v471, %v473
    %v477 = vrot.slane %v475, 6
    %v478 = vrot.slane %v476, 6
    %vm479 = vcmp.le.f32.partialorder %v475, %v477
    %v480 = vsel %vm479, %v475, %v477
    %v481 = vsel %vm479, %v476, %v478
    %v482 = vrot.slane %v480, 7
    %v483 = vrot.slane %v481, 7
    %vm484 = vcmp.le.f32.partialorder %v480, %v482
    %v485 = vsel %vm484, %v481, %v483
    %v486 = vlaneseq
    %v487 = vshrl.u32 %v486, 7
    %v488 = vsub.s32 0, %v487
    %v489 = vrot.slane %v485, %v488
    %vm490 = vcmp.eq.s32.totalorder %v411, %v489
    %vm491 = vcmp.eq.s32.totalorder %v412, %v489
    %vm492 = vcmp.eq.s32.totalorder %v416, %v489
    %vm493 = vcmp.eq.s32.totalorder %v420, %v489
    %vm494 = vcmp.eq.s32.totalorder %v424, %v489
    %vm495 = vcmp.eq.s32.totalorder %v428, %v489
    %vm496 = vcmp.eq.s32.totalorder %v432, %v489
    %vm497 = vcmp.eq.s32.totalorder %v436, %v489
    %vm498 = vcmp.eq.s32.totalorder %v440, %v489
    %vm499 = vcmp.eq.s32.totalorder %v444, %v489
    %vm500 = vcmp.eq.s32.totalorder %v448, %v489
    %vm501 = vcmp.eq.s32.totalorder %v452, %v489
    %vm502 = vcmp.eq.s32.totalorder %v456, %v489
    %vm503 = vcmp.eq.s32.totalorder %v460, %v489
    %vm504 = vcmp.eq.s32.totalorder %v464, %v489
    %vm505 = vcmp.eq.s32.totalorder %v468, %v489
    %v506 = vsel %vm490, 1, 0
    %v507 = vsel %vm491, 1, 0
    %v508 = vsel %vm492, 1, 0
    %v509 = vsel %vm493, 1, 0
    %v510 = vsel %vm494, 1, 0
    %v511 = vsel %vm495, 1, 0
    %v512 = vsel %vm496, 1, 0
    %v513 = vsel %vm497, 1, 0
    %v514 = vsel %vm498, 1, 0
    %v515 = vsel %vm499, 1, 0
    %v516 = vsel %vm500, 1, 0
    %v517 = vsel %vm501, 1, 0
    %v518 = vsel %vm502, 1, 0
    %v519 = vsel %vm503, 1, 0
    %v520 = vsel %vm504, 1, 0
    %v521 = vsel %vm505, 1, 0
    %v522 = vcvt.s32.f32 %v506
    %v523 = vcvt.s32.f32 %v507
    %v524 = vcvt.s32.f32 %v508
    %v525 = vcvt.s32.f32 %v509
    %v526 = vcvt.s32.f32 %v510
    %v527 = vcvt.s32.f32 %v511
    %v528 = vcvt.s32.f32 %v512
    %v529 = vcvt.s32.f32 %v513
    %v530 = vcvt.s32.f32 %v514
    %v531 = vcvt.s32.f32 %v515
    %v532 = vcvt.s32.f32 %v516
    %v533 = vcvt.s32.f32 %v517
    %v534 = vcvt.s32.f32 %v518
    %v535 = vcvt.s32.f32 %v519
    %v536 = vcvt.s32.f32 %v520
    %v537 = vcvt.s32.f32 %v521
    %538 = vmatprep.subr.mxu0 0.0
    %539 = vmatpush1.msra.mxu0 %v537
    %540 = vmatprep.subr.mxu0 0.0
    %541 = vmatpush1.msra.mxu0 %v536
    %542 = vmatprep.subr.mxu0 0.0
    %543 = vmatpush1.msra.mxu0 %v535
    %544 = vmatprep.subr.mxu0 0.0
    %545 = vmatpush1.msra.mxu0 %v534
    %546 = vmatprep.subr.mxu0 0.0
    %547 = vmatpush1.msra.mxu0 %v533
    %548 = vmatprep.subr.mxu0 0.0
    %549 = vmatpush1.msra.mxu0 %v532
    %550 = vmatprep.subr.mxu0 0.0
    %551 = vmatpush1.msra.mxu0 %v531
    %552 = vmatprep.subr.mxu0 0.0
    %553 = vmatpush1.msra.mxu0 %v530
    %554 = vmatprep.subr.mxu0 0.0
    %555 = vmatpush1.msra.mxu0 %v529
    %556 = vmatprep.subr.mxu0 0.0
    %557 = vmatpush1.msra.mxu0 %v528
    %558 = vmatprep.subr.mxu0 0.0
    %559 = vmatpush1.msra.mxu0 %v527
    %560 = vmatprep.subr.mxu0 0.0
    %561 = vmatpush1.msra.mxu0 %v526
    %562 = vmatprep.subr.mxu0 0.0
    %563 = vmatpush1.msra.mxu0 %v525
    %564 = vmatprep.subr.mxu0 0.0
    %565 = vmatpush1.msra.mxu0 %v524
    %566 = vmatprep.subr.mxu0 0.0
    %567 = vmatpush1.msra.mxu0 %v523
    %568 = vmatprep.subr.mxu0 0.0
    %569 = vmatpush1.msra.mxu0 %v522
    %570 = vmatprep.subr.mxu0 0.0
    %571 = vmatpush2.msra.mxu0 0.0
    %572 = vmatprep.subr.mxu0 0.0
    %573 = vmatpush2.msra.mxu0 0.0
    %574 = vmatprep.subr.mxu0 0.0
    %575 = vmatpush2.msra.mxu0 0.0
    %576 = vmatprep.subr.mxu0 0.0
    %577 = vmatpush2.msra.mxu0 0.0
    %578 = vmatprep.subr.mxu0 0.0
    %579 = vmatpush2.msra.mxu0 0.0
    %580 = vmatprep.subr.mxu0 0.0
    %581 = vmatpush2.msra.mxu0 0.0
    %582 = vmatprep.subr.mxu0 0.0
    %583 = vmatpush2.msra.mxu0 0.0
    %584 = vmatprep.subr.mxu0 0.0
    %585 = vmatpush2.msra.mxu0 0.0
    %586 = vmatprep.subr.mxu0 0.0
    %587 = vmatpush2.msra.mxu0 0.0
    %588 = vmatprep.subr.mxu0 0.0
    %589 = vmatpush2.msra.mxu0 0.0
    %590 = vmatprep.subr.mxu0 0.0
    %591 = vmatpush2.msra.mxu0 0.0
    %592 = vmatprep.subr.mxu0 0.0
    %593 = vmatpush2.msra.mxu0 0.0
    %594 = vmatprep.subr.mxu0 0.0
    %595 = vmatpush2.msra.mxu0 0.0
    %596 = vmatprep.subr.mxu0 0.0
    %597 = vmatpush2.msra.mxu0 0.0
    %598 = vmatprep.subr.mxu0 0.0
    %599 = vmatpush2.msra.mxu0 0.0
    %600 = vmatprep.subr.mxu0 0.0
    %601 = vmatpush2.msra.mxu0 0.0
    %602 = vmatprep.mubr.f32.mxu0 0.0
    %603 = vmatmul.mubr.f32.gmra.mxu0 %v52
    %v604 = vpop.f32.mrf.mxu0
    %v605 = vadd.f32 0.0, %v604
    %v606 = vpop.f32.mrf.mxu0
    %607 = vmatprep.mubr.f32.mxu0 0.0
    %608 = vmatmul.mubr.f32.gmra.mxu0 %v53
    %v609 = vpop.f32.mrf.mxu0
    %v610 = vadd.f32 0.0, %v609
    %v611 = vpop.f32.mrf.mxu0
    %612 = vmatprep.mubr.f32.mxu0 0.0
    %613 = vmatmul.mubr.f32.gmra.mxu0 %v54
    %v614 = vpop.f32.mrf.mxu0
    %v615 = vadd.f32 0.0, %v614
    %v616 = vpop.f32.mrf.mxu0
    %617 = vmatprep.mubr.f32.mxu0 0.0
    %618 = vmatmul.mubr.f32.gmra.mxu0 %v55
    %v619 = vpop.f32.mrf.mxu0
    %v620 = vadd.f32 0.0, %v619
    %v621 = vpop.f32.mrf.mxu0
    %622 = vdwg.mxu0
    %623 = vst [vmem:[#allocation2] sm:$0xff] %v605
    %624 = vst [vmem:[#allocation2 + $0x8] sm:$0xff] %v610
    %625 = vst [vmem:[#allocation2 + $0x10] sm:$0xff] %v615
    %626 = vst [vmem:[#allocation2 + $0x18] sm:$0xff] %v620
    %627 = vadd.xlane.f32.xlu0 %v522
    %v628 = vpop.xlane.xlu0 %627
    %629 = vadd.xlane.f32.xlu0 %v523
    %v630 = vpop.xlane.xlu0 %629
    %631 = vadd.xlane.f32.xlu0 %v524
    %v632 = vpop.xlane.xlu0 %631
    %633 = vadd.xlane.f32.xlu0 %v525
    %v634 = vpop.xlane.xlu0 %633
    %635 = vadd.xlane.f32.xlu0 %v526
    %v636 = vpop.xlane.xlu0 %635
    %637 = vadd.xlane.f32.xlu0 %v527
    %v638 = vpop.xlane.xlu0 %637
    %639 = vadd.xlane.f32.xlu0 %v528
    %v640 = vpop.xlane.xlu0 %639
    %641 = vadd.xlane.f32.xlu0 %v529
    %v642 = vpop.xlane.xlu0 %641
    %643 = vadd.xlane.f32.xlu0 %v530
    %v644 = vpop.xlane.xlu0 %643
    %645 = vadd.xlane.f32.xlu0 %v531
    %v646 = vpop.xlane.xlu0 %645
    %647 = vadd.xlane.f32.xlu0 %v532
    %v648 = vpop.xlane.xlu0 %647
    %649 = vadd.xlane.f32.xlu0 %v533
    %v650 = vpop.xlane.xlu0 %649
    %651 = vadd.xlane.f32.xlu0 %v534
    %v652 = vpop.xlane.xlu0 %651
    %653 = vadd.xlane.f32.xlu0 %v535
    %v654 = vpop.xlane.xlu0 %653
    %655 = vadd.xlane.f32.xlu0 %v536
    %v656 = vpop.xlane.xlu0 %655
    %657 = vadd.xlane.f32.xlu0 %v537
    %v658 = vpop.xlane.xlu0 %657
    %vm659 = vcmask 7168
    %660 = vst.msk [vmem:[%s5] sm:$0xff] %vm659, %v628
    %661 = vst.msk [vmem:[%s5 + $0x8] sm:$0xff] %vm659, %v630
    %662 = vst.msk [vmem:[%s5 + $0x10] sm:$0xff] %vm659, %v632
    %663 = vst.msk [vmem:[%s5 + $0x18] sm:$0xff] %vm659, %v634
    %664 = vst.msk [vmem:[%s5 + $0x20] sm:$0xff] %vm659, %v636
    %665 = vst.msk [vmem:[%s5 + $0x28] sm:$0xff] %vm659, %v638
    %666 = vst.msk [vmem:[%s5 + $0x30] sm:$0xff] %vm659, %v640
    %667 = vst.msk [vmem:[%s5 + $0x38] sm:$0xff] %vm659, %v642
    %668 = vst.msk [vmem:[%s5 + $0x40] sm:$0xff] %vm659, %v644
    %669 = vst.msk [vmem:[%s5 + $0x48] sm:$0xff] %vm659, %v646
    %670 = vst.msk [vmem:[%s5 + $0x50] sm:$0xff] %vm659, %v648
    %671 = vst.msk [vmem:[%s5 + $0x58] sm:$0xff] %vm659, %v650
    %672 = vst.msk [vmem:[%s5 + $0x60] sm:$0xff] %vm659, %v652
    %673 = vst.msk [vmem:[%s5 + $0x68] sm:$0xff] %vm659, %v654
    %674 = vst.msk [vmem:[%s5 + $0x70] sm:$0xff] %vm659, %v656
    %675 = vst.msk [vmem:[%s5 + $0x78] sm:$0xff] %vm659, %v658
    // Predicated region
    $region18: #{tpu_custom_call.1} parent=1 // pred_check
      _
    $region19: #{tpu_custom_call.1} parent=1 // pred_check_branch
      %677 = sbr.rel (0) target = $region21
    $region20: #{tpu_custom_call.1} parent=1 // pred_region
      %s679 = ssub.s32 512, 512
      %680 = vsyncadd [#allocation3], %s679
      %s681 = sshll.u32 [#allocation2], 4
      %s682 = int_to_ptr.vmem [resolvable:$true] %s681
      %687 = dma.vmem_to_hbm [thread:$0]  %s682, 512, %s4, [#allocation3], 128, 128, 8
    $region21: #{tpu_custom_call.1} parent=1 // pred_fallthru
      _
    // Predicated region
    $region22: #{tpu_custom_call.1} parent=1 // pred_check
      _
    $region23: #{tpu_custom_call.1} parent=1 // pred_check_branch
      %689 = sbr.rel (0) target = $region25
    $region24: #{tpu_custom_call.1} parent=1 // pred_region
      _
    $region25: #{tpu_custom_call.1} parent=1 // pred_fallthru
      _
    // Predicated region
    $region26: #{tpu_custom_call.1} parent=1 // pred_check
      _
    $region27: #{tpu_custom_call.1} parent=1 // pred_check_branch
      %691 = sbr.rel (0) target = $region29
    $region28: #{tpu_custom_call.1} parent=1 // pred_region
      %692 = dma.done [#allocation3], 512
    $region29: #{tpu_custom_call.1} parent=1 // pred_fallthru
      _
    // Predicated region
    $region30: #{tpu_custom_call.1} parent=1 // pred_check
      _
    $region31: #{tpu_custom_call.1} parent=1 // pred_check_branch
      %694 = sbr.rel (0) target = $region33
    $region32: #{tpu_custom_call.1} parent=1 // pred_region
      _
    $region33: #{tpu_custom_call.1} parent=1 // pred_fallthru
      _
    %695 = vsyncpa [#allocation3], 1

</llo_original>
